<compile_context>
chip_gen: v7x
topology: tpu7x:2x2x1
jax: 0.10.0
libtpu: 0.0.40
codegen_flags: <defaults>
</compile_context>

<pallas_src>
import math

import numpy as np
import jax
import jax.numpy as jnp
from jax.experimental import pallas as pl
from jax.experimental.pallas import tpu as pltpu


_LANES = 128


# ---------------------------------------------------------------------------
# Kernel: fused complex soft-threshold on one (row_tile, 128) slab
# ---------------------------------------------------------------------------
def _cv_soft_threshold_kernel(theta_ref, xr_ref, xi_ref, or_ref, oi_ref):
    theta = theta_ref[0]                     # scalar from SMEM
    xr = xr_ref[...]
    xi = xi_ref[...]

    abs_x = jnp.sqrt(xr * xr + xi * xi)      # |x|
    shrink = jnp.maximum(abs_x - theta, 0.0)  # relu(|x| - theta)
    # Single divide per element (vs two in the torch reference); 0/0 -> nan,
    # matching torch.div(x.real, abs_x) semantics when |x| == 0.
    scale = shrink / abs_x

    or_ref[...] = xr * scale
    oi_ref[...] = xi * scale


# ---------------------------------------------------------------------------
# Wrapper: lane-dense re-layout, tiling, complex pack/unpack
# ---------------------------------------------------------------------------
def cv_soft_threshold_planes(x_real, x_imag, theta, *, max_tile_rows=1024):
    """x_real, x_imag: float32 arrays of identical shape; theta: float32 (1,)."""
    orig_shape = x_real.shape
    n = math.prod(orig_shape)

    rows = -(-n // _LANES)                                   # ceil(n / 128)
    row_tile = min(max_tile_rows, -(-rows // 8) * 8)         # multiple of 8
    num_tiles = -(-rows // row_tile)
    rows_padded = num_tiles * row_tile
    pad = rows_padded * _LANES - n

    xr = jnp.pad(x_real.reshape(-1), (0, pad)).reshape(rows_padded, _LANES)
    xi = jnp.pad(x_imag.reshape(-1), (0, pad)).reshape(rows_padded, _LANES)

    blk = pl.BlockSpec((row_tile, _LANES), lambda i: (i, 0))
    theta_spec = pl.BlockSpec(memory_space=pltpu.MemorySpace.SMEM)

    out_r, out_i = pl.pallas_call(
        _cv_soft_threshold_kernel,
        out_shape=(
            jax.ShapeDtypeStruct((rows_padded, _LANES), jnp.float32),
            jax.ShapeDtypeStruct((rows_padded, _LANES), jnp.float32),
        ),
        grid=(num_tiles,),
        in_specs=[theta_spec, blk, blk],
        out_specs=(blk, blk),
        compiler_params=pltpu.CompilerParams(
            dimension_semantics=("parallel",),
        ),
    )(theta.astype(jnp.float32).reshape(1), xr, xi)

    out_r = out_r.reshape(-1)[:n].reshape(orig_shape)
    out_i = out_i.reshape(-1)[:n].reshape(orig_shape)
    return out_r, out_i


def cv_soft_threshold_2d(x_complex, theta):
    """Complex-in / complex-out interface matching the PyTorch module."""
    xr = jnp.real(x_complex).astype(jnp.float32)
    xi = jnp.imag(x_complex).astype(jnp.float32)
    out_r, out_i = cv_soft_threshold_planes(xr, xi, theta)
    return jax.lax.complex(out_r, out_i)     # complex64


# ---------------------------------------------------------------------------
# Pure-jnp reference (mirrors the PyTorch forward exactly)
# ---------------------------------------------------------------------------
def reference(x_complex, theta):
    r = jnp.real(x_complex)
    i = jnp.imag(x_complex)
    abs_x = jnp.sqrt(r * r + i * i)
    b = jax.nn.relu(abs_x - theta[0])
    r_out = (r / abs_x) * b
    i_out = (i / abs_x) * b
    return jax.lax.complex(r_out, i_out)


# ---------------------------------------------------------------------------
if __name__ == "__main__":
    # Small 3-D ('ijk') complex input, e.g. (batch=2, seq=8, hidden=32).
    B, S, D = 2, 8, 32
    key = jax.random.PRNGKey(0)
    k1, k2 = jax.random.split(key)

    xr = jax.random.normal(k1, (B, S, D), jnp.float32)
    xi = jax.random.normal(k2, (B, S, D), jnp.float32)
    x = jax.lax.complex(xr, xi)

    # nn.Parameter initialized to zeros would make the op the identity;
    # use a nonzero threshold so the test actually exercises the shrinkage.
    theta = jnp.array([0.5], dtype=jnp.float32)

    fwd = jax.jit(cv_soft_threshold_2d)
    out = fwd(x, theta)
    jax.block_until_ready(out)

    ref = reference(x, theta)
    np.testing.assert_allclose(np.asarray(jnp.real(out)), np.asarray(jnp.real(ref)),
                               rtol=1e-5, atol=1e-6)
    np.testing.assert_allclose(np.asarray(jnp.imag(out)), np.asarray(jnp.imag(ref)),
                               rtol=1e-5, atol=1e-6)

    print("KERNEL_OK")
</pallas_src>

<mosaic_0001>
module attributes {stable_mosaic.version = 11 : i64} {
  func.func @_cv_soft_threshold_kernel(%arg0: i32, %arg1: memref<1xf32, #tpu.memory_space<smem>>, %arg2: memref<8x128xf32, #tpu.memory_space<vmem>>, %arg3: memref<8x128xf32, #tpu.memory_space<vmem>>, %arg4: memref<8x128xf32, #tpu.memory_space<vmem>>, %arg5: memref<8x128xf32, #tpu.memory_space<vmem>>) attributes {dimension_semantics = [#tpu.dimension_semantics<parallel>], iteration_bounds = array<i64: 1>, scalar_prefetch = 0 : i64, scratch_operands = 0 : i64, tpu.core_type = #tpu.core_type<tc>, window_params = [{transform_indices = @transform_0, window_bounds = array<i64: 1>}, {transform_indices = @transform_1, window_bounds = array<i64: 8, 128>}, {transform_indices = @transform_2, window_bounds = array<i64: 8, 128>}, {transform_indices = @transform_3, window_bounds = array<i64: 8, 128>}, {transform_indices = @transform_4, window_bounds = array<i64: 8, 128>}]} {
    %c0 = arith.constant 0 : index
    %0 = memref.load %arg1[%c0] : memref<1xf32, #tpu.memory_space<smem>>
    %c0_0 = arith.constant 0 : index
    %c0_1 = arith.constant 0 : index
    %1 = vector.load %arg2[%c0_0, %c0_1] : memref<8x128xf32, #tpu.memory_space<vmem>>, vector<8x128xf32>
    %c0_2 = arith.constant 0 : index
    %c0_3 = arith.constant 0 : index
    %2 = vector.load %arg3[%c0_2, %c0_3] : memref<8x128xf32, #tpu.memory_space<vmem>>, vector<8x128xf32>
    %3 = arith.mulf %1, %1 : vector<8x128xf32>
    %4 = arith.mulf %2, %2 : vector<8x128xf32>
    %5 = arith.addf %3, %4 : vector<8x128xf32>
    %6 = math.sqrt %5 : vector<8x128xf32>
    %7 = vector.broadcast %0 : f32 to vector<8x128xf32>
    %8 = arith.subf %6, %7 : vector<8x128xf32>
    %cst = arith.constant 0.000000e+00 : f32
    %9 = vector.broadcast %cst : f32 to vector<8x128xf32>
    %10 = arith.maximumf %8, %9 : vector<8x128xf32>
    %11 = arith.divf %10, %6 : vector<8x128xf32>
    %12 = arith.mulf %1, %11 : vector<8x128xf32>
    %c0_4 = arith.constant 0 : index
    %c0_5 = arith.constant 0 : index
    %13 = vector.load %arg4[%c0_4, %c0_5] : memref<8x128xf32, #tpu.memory_space<vmem>>, vector<8x128xf32>
    tpu.vector_store %arg4[%c0_4, %c0_5], %12 {strides = array<i32>} : memref<8x128xf32, #tpu.memory_space<vmem>>, vector<8x128xf32>,
    %14 = arith.mulf %2, %11 : vector<8x128xf32>
    %c0_6 = arith.constant 0 : index
    %c0_7 = arith.constant 0 : index
    %15 = vector.load %arg5[%c0_6, %c0_7] : memref<8x128xf32, #tpu.memory_space<vmem>>, vector<8x128xf32>
    tpu.vector_store %arg5[%c0_6, %c0_7], %14 {strides = array<i32>} : memref<8x128xf32, #tpu.memory_space<vmem>>, vector<8x128xf32>,
    return
  }
  func.func @transform_0(%arg0: i32) -> i32 {
    %c0_i32 = arith.constant 0 : i32
    %c0_i32_0 = arith.constant 0 : i32
    return %c0_i32 : i32
  }
  func.func @transform_1(%arg0: i32) -> (i32, i32) {
    %c0_i32 = arith.constant 0 : i32
    %c0_i32_0 = arith.constant 0 : i32
    return %arg0, %c0_i32 : i32, i32
  }
  func.func @transform_2(%arg0: i32) -> (i32, i32) {
    %c0_i32 = arith.constant 0 : i32
    %c0_i32_0 = arith.constant 0 : i32
    return %arg0, %c0_i32 : i32, i32
  }
  func.func @transform_3(%arg0: i32) -> (i32, i32) {
    %c0_i32 = arith.constant 0 : i32
    %c0_i32_0 = arith.constant 0 : i32
    return %arg0, %c0_i32 : i32, i32
  }
  func.func @transform_4(%arg0: i32) -> (i32, i32) {
    %c0_i32 = arith.constant 0 : i32
    %c0_i32_0 = arith.constant 0 : i32
    return %arg0, %c0_i32 : i32, i32
  }
}

</mosaic_0001>

<llo_original>
// kernel: custom-call
$region0: #{custom-call}
  %s0 = inlined_call_operand.hbm [shape: c64[2,8,32], index: 0, kind: input, shape index: {}]
  %s1 = inlined_call_operand.vmem [shape: f32[2,8,32], index: 1, kind: output, shape index: {}]
  $region1: #{custom-call} parent=0
    #allocation0 [shape = 's32[1]{0}', space=sflag, size = 0x4, scoped, tag = 'scoped memory for custom-call']
    %2 = vsyncpa [#allocation0], 0
    %s3 = sshll.u32 %s1, 4
    %s4 = int_to_ptr.vmem [resolvable:$true] %s3
    %6 = dma.hbm_to_vmem [thread:$0]  %s0, 256, %s4, [#allocation0]
    %7 = dma.done [#allocation0], 256
    %8 = vsyncpa [#allocation0], 1

// kernel: custom-call.1
$region0: #{custom-call.1}
  %s0 = inlined_call_operand.hbm [shape: c64[2,8,32], index: 0, kind: input, shape index: {}]
  %s1 = inlined_call_operand.vmem [shape: f32[2,8,32], index: 1, kind: output, shape index: {}]
  %s2 = scalar_lea.hbm %s0, 256
  $region1: #{custom-call.1} parent=0
    #allocation0 [shape = 's32[1]{0}', space=sflag, size = 0x4, scoped, tag = 'scoped memory for custom-call.1']
    %3 = vsyncpa [#allocation0], 0
    %s4 = sshll.u32 %s1, 4
    %s5 = int_to_ptr.vmem [resolvable:$true] %s4
    %7 = dma.hbm_to_vmem [thread:$0]  %s2, 256, %s5, [#allocation0]
    %8 = dma.done [#allocation0], 256
    %9 = vsyncpa [#allocation0], 1

// kernel: custom-call.2
$region0: #{custom-call.2}
  %s0 = inlined_call_operand.vmem [shape: f32[2,8,32], index: 0, kind: input, shape index: {}]
  %s1 = inlined_call_operand.vmem [shape: f32[2,8,32], index: 1, kind: input, shape index: {}]
  %s2 = inlined_call_operand.hbm [shape: c64[2,8,32], index: 2, kind: output, shape index: {}]
  %s3 = scalar_lea.hbm %s2, 256
  $region1: #{custom-call.2} parent=0
    #allocation0 [shape = 's32[1]{0}', space=sflag, size = 0x4, scoped, tag = 'scoped memory for custom-call.2']
    %4 = vsyncpa [#allocation0], 0
    %s5 = sshll.u32 %s0, 4
    %s6 = int_to_ptr.vmem [resolvable:$true] %s5
    %8 = dma.vmem_to_hbm [thread:$0]  %s6, 256, %s2, [#allocation0]
    %9 = dma.done [#allocation0], 256
    %10 = vsyncpa [#allocation0], 1
  $region2: #{custom-call.2} parent=0
    #allocation1 [shape = 's32[1]{0}', space=sflag, size = 0x4, scoped, tag = 'scoped memory for custom-call.2']
    %11 = vsyncpa [#allocation1], 0
    %s12 = sshll.u32 %s1, 4
    %s13 = int_to_ptr.vmem [resolvable:$true] %s12
    %15 = dma.vmem_to_hbm [thread:$0]  %s13, 256, %s3, [#allocation1]
    %16 = dma.done [#allocation1], 256
    %17 = vsyncpa [#allocation1], 1

// kernel: cv_soft_threshold_2d.1
$region0: #{cv_soft_threshold_2d.1}
  #allocation0 [shape = 'u32[]', space=smem, size = 0x4, offset = 0x4, fixed_abs, tag = 'smem constant byte address 0x4 - core index']
  #allocation1 [shape = 'u32[144,128]{1,0:T(1,128)}', space=vmem, size = 0x12000, scoped, tag = 'internal scratch']
  #allocation2 [shape = 'f32[1]{0:T(128)S(6)}', space=smem, size = 0x200, scoped, tag = 'scoped memory for cv_soft_threshold_2d.1']
  %s0 = inlined_call_operand.<no memory space> [shape: f32[1], index: 0, kind: input, shape index: {}]
  %s1 = inlined_call_operand.vmem [shape: f32[8,128], index: 1, kind: input, shape index: {}]
  %s2 = inlined_call_operand.vmem [shape: f32[8,128], index: 2, kind: input, shape index: {}]
  %s3 = inlined_call_operand.vmem [shape: f32[8,128], index: 3, kind: output, shape index: {0}]
  %s4 = inlined_call_operand.vmem [shape: f32[8,128], index: 4, kind: output, shape index: {1}]
  %5 = xla_tuple %s3, %s4
  %s6 = sld [smem:[#allocation0]]
  $region30: #{cv_soft_threshold_2d.1} parent=0
    _
  %s8 = ssub.s32 1, %s6
  %s9 = scalar_select 0, %s8, %s6
  %10 = sst [smem:[#allocation2]] %s0
  // Predicated region
  $region2: #{cv_soft_threshold_2d.1} parent=0 // pred_check
    _
  $region3: #{cv_soft_threshold_2d.1} parent=0 // pred_check_branch
    %12 = sbr.rel (0) target = $region5
  $region4: #{cv_soft_threshold_2d.1} parent=0 // pred_region
    _
  $region5: #{cv_soft_threshold_2d.1} parent=0 // pred_fallthru
    _
  // Predicated region
  $region6: #{cv_soft_threshold_2d.1} parent=0 // pred_check
    _
  $region7: #{cv_soft_threshold_2d.1} parent=0 // pred_check_branch
    %14 = sbr.rel (0) target = $region9
  $region8: #{cv_soft_threshold_2d.1} parent=0 // pred_region
    _
  $region9: #{cv_soft_threshold_2d.1} parent=0 // pred_fallthru
    _
  // Predicated region
  $region10: #{cv_soft_threshold_2d.1} parent=0 // pred_check
    _
  $region11: #{cv_soft_threshold_2d.1} parent=0 // pred_check_branch
    %16 = sbr.rel (0) target = $region13
  $region12: #{cv_soft_threshold_2d.1} parent=0 // pred_region
    _
  $region13: #{cv_soft_threshold_2d.1} parent=0 // pred_fallthru
    _
  %s17 = sld [smem:[#allocation2]]
  %v18 = vld [vmem:[%s1] sm:$0xff]
  %v19 = vld [vmem:[%s2] sm:$0xff]
  %v20 = vmul.f32 %v18, %v18
  %v21 = vmul.f32 %v19, %v19
  %v22 = vadd.f32 %v20, %v21
  %v23 = vrsqrt.pop %v22
  %v24 = vmul.f32 %v22, %v23
  %vm25 = vcmp.eq.f32.partialorder %v22, inf
  %v26 = vsel %vm25, %v22, %v24
  %vm27 = vcmp.eq.f32.partialorder %v22, 0.0
  %v28 = vand.u32 %v22, 2147483648
  %v29 = vsel %vm27, %v28, %v26
  %v30 = vstv %s17
  %v31 = vsub.f32 %v29, %v30
  %v32 = vmax.f32 %v31, 0.0
  %v33 = vrcp.pop %v29
  %v34 = vmul.f32 %v32, %v33
  %v35 = vmul.f32 %v18, %v34
  %36 = vst [vmem:[%s3] sm:$0xff] %v35
  %v37 = vmul.f32 %v19, %v34
  %38 = vst [vmem:[%s4] sm:$0xff] %v37
  // Predicated region
  $region14: #{cv_soft_threshold_2d.1} parent=0 // pred_check
    _
  $region15: #{cv_soft_threshold_2d.1} parent=0 // pred_check_branch
    %40 = sbr.rel (0) target = $region17
  $region16: #{cv_soft_threshold_2d.1} parent=0 // pred_region
    _
  $region17: #{cv_soft_threshold_2d.1} parent=0 // pred_fallthru
    _
  // Predicated region
  $region18: #{cv_soft_threshold_2d.1} parent=0 // pred_check
    _
  $region19: #{cv_soft_threshold_2d.1} parent=0 // pred_check_branch
    %42 = sbr.rel (0) target = $region21
  $region20: #{cv_soft_threshold_2d.1} parent=0 // pred_region
    _
  $region21: #{cv_soft_threshold_2d.1} parent=0 // pred_fallthru
    _
  // Predicated region
  $region22: #{cv_soft_threshold_2d.1} parent=0 // pred_check
    _
  $region23: #{cv_soft_threshold_2d.1} parent=0 // pred_check_branch
    %44 = sbr.rel (0) target = $region25
  $region24: #{cv_soft_threshold_2d.1} parent=0 // pred_region
    _
  $region25: #{cv_soft_threshold_2d.1} parent=0 // pred_fallthru
    _
  // Predicated region
  $region26: #{cv_soft_threshold_2d.1} parent=0 // pred_check
    _
  $region27: #{cv_soft_threshold_2d.1} parent=0 // pred_check_branch
    %46 = sbr.rel (0) target = $region29
  $region28: #{cv_soft_threshold_2d.1} parent=0 // pred_region
    _
  $region29: #{cv_soft_threshold_2d.1} parent=0 // pred_fallthru
    _

</llo_original>
